<compile_context>
chip_gen: v7x
topology: tpu7x:2x2x1
jax: 0.10.0
libtpu: 0.0.40
codegen_flags: <defaults>
</compile_context>

<pallas_src>
import functools

import jax
import jax.numpy as jnp
from jax.experimental import pallas as pl
from jax.experimental.pallas import tpu as pltpu


_K_PAD = 8  # extra contraction columns: [bias, zeros...] -> K stays a multiple of 8


# ---------------------------------------------------------------------------
# Kernel: the entire two-Linear model, pre-folded, as a single GEMM.
#   x_ref : (D1*D2 + 8, B*C)  = x1 relayout + ones-row (bias) + zero rows   (24, 128)
#   w_ref : (JH*H, D1*D2 + 8) = packed effective weights + bias column      (32, 24)
#   o_ref : (JH*H, B*C)       = Y, lane-dense (last dim = 128)              (32, 128)
# ---------------------------------------------------------------------------
def _fused_model_kernel(x_ref, w_ref, o_ref):
    o_ref[...] = jnp.dot(w_ref[...], x_ref[...],
                         preferred_element_type=jnp.float32)


# ---------------------------------------------------------------------------
# Init-time fold of (Linear1 -> permutation -> Linear2) into one packed operand.
# Column layout of the result (shape (JH*H, D1*D2 + _K_PAD)):
#   [:, d1*D2 + k]  effective weight,  [:, D1*D2]  effective bias,  rest zeros.
# ---------------------------------------------------------------------------
def pack_effective_params(params, d1, d2):
    w1, b1, w2, b2 = params["w1"], params["b1"], params["w2"], params["b2"]
    H = w1.shape[0]
    JH = H // d2
    hi = jax.lax.Precision.HIGHEST
    blocks = []
    for jh in range(JH):
        w1_blk = w1[jh * d2:(jh + 1) * d2, :]          # (D2, I)
        b1_blk = b1[jh * d2:(jh + 1) * d2]             # (D2,)
        w_eff = jnp.concatenate(
            [jnp.dot(w2[:, i * d2:(i + 1) * d2], w1_blk, precision=hi)
             for i in range(d1)], axis=1)              # (H, D1*I)
        b_eff = sum(jnp.dot(w2[:, i * d2:(i + 1) * d2], b1_blk, precision=hi)
                    for i in range(d1)) + b2           # (H,)
        blocks.append(jnp.concatenate(
            [w_eff, b_eff[:, None], jnp.zeros((H, _K_PAD - 1), jnp.float32)],
            axis=1))                                    # (H, D1*I + 8)
    return jnp.concatenate(blocks, axis=0)              # (JH*H, D1*I + 8)


# ---------------------------------------------------------------------------
# Model.forward (both Attention blocks) — one pallas_call + layout plumbing.
# ---------------------------------------------------------------------------
def model_forward(x1, w_packed):
    B, C, D1, D2 = x1.shape
    NR, K = w_packed.shape
    H = K - _K_PAD                       # dim_hidden
    JH = NR // H                         # number of 128-wide output strips

    # Attention1 .view constraints + conditions the fold was derived for
    # (toy config: B=2, C=64, D1=2, D2=8, H=16).
    assert C == D2 * D2, "Attention1 .view constraint (c_input == q*q)"
    assert H == D1 * D2 and JH == D1 and B == D1 and C % H == 0, \
        "fold specialized to dim_hidden == D1*dim_input and batch == D1"

    BC = B * C                           # 128: lane width (one full lane tile)

    # Lane-dense relayout of x1 + ones row (bias) + zero rows (contraction pad).
    # x1s[d1*D2 + k, b*C + c] = x1[b, c, d1, k].  Allowed to fuse into the call.
    x1s = jnp.transpose(x1, (2, 3, 0, 1)).reshape(D1 * D2, BC)
    x_aug = jnp.concatenate(
        [x1s,
         jnp.ones((1, BC), x1s.dtype),
         jnp.zeros((K - H - 1, BC), x1s.dtype)], axis=0)        # (24, 128)

    y = pl.pallas_call(
        _fused_model_kernel,
        out_shape=jax.ShapeDtypeStruct((NR, BC), jnp.float32),
        grid=(1,),
        in_specs=[
            pl.BlockSpec((K, BC), lambda i: (0, 0)),    # augmented x   (24, 128)
            pl.BlockSpec((NR, K), lambda i: (0, 0)),    # packed W+b    (32, 24)
        ],
        out_specs=pl.BlockSpec((NR, BC), lambda i: (0, 0)),
        compiler_params=pltpu.CompilerParams(
            dimension_semantics=("arbitrary",),
            allow_input_fusion=[True, False]),
    )(x_aug, w_packed)

    # Output glue (attention2's view/transpose/view) — layout plumbing only.
    #   y[jh*H + n, b*C + c]  with  c = c_hi*H + c_lo
    B2 = B // D1
    y5 = y.reshape(JH, H, B, C // H, H)           # [jh, n, b, c_hi, c_lo]
    out = jnp.transpose(y5, (2, 0, 3, 4, 1))      # [b, jh, c_hi, c_lo, n]
    return out.reshape(H * B2, H * H, 1)


# ---------------------------------------------------------------------------
# Pure-JAX reference mirroring the per-layer torch semantics (ground truth).
# ---------------------------------------------------------------------------
def _reference_attention(inputs, w, b, q, k):
    bsz, c, d1, d2 = inputs.shape
    y = jnp.einsum("bcdi,oi->bcdo", inputs, w,
                   precision=jax.lax.Precision.HIGHEST) + b
    y = y.reshape(bsz, k, q, d1, d2)              # .view(batch, k, q, d1, d2)
    y = jnp.transpose(y, (0, 1, 3, 2, 4))         # .transpose(2, 3)
    y = jnp.transpose(y, (0, 2, 1, 3, 4))         # .transpose(1, 2)
    return y.reshape(bsz * q, k * d1 * d2, 1)     # .view(batch*q, k*d1*d2, 1)


def reference_model(x1, params):
    w1, b1, w2, b2 = params["w1"], params["b1"], params["w2"], params["b2"]
    H, I = w1.shape
    r1 = _reference_attention(x1, w1, b1, I, H)
    b2_batch = r1.size // (H * H * H)             # the unique reshape bridge
    r1_4d = r1.reshape(b2_batch, H * H, 1, H)
    return _reference_attention(r1_4d, w2, b2, H, H)


# ---------------------------------------------------------------------------
# Deterministic parameter init (PyTorch Linear-style uniform(-1/sqrt(K), 1/sqrt(K)))
# ---------------------------------------------------------------------------
def init_params(key, dim_input, dim_hidden):
    k1, k2, k3, k4 = jax.random.split(key, 4)
    bound1 = 1.0 / jnp.sqrt(float(dim_input))
    bound2 = 1.0 / jnp.sqrt(float(dim_hidden))
    return {
        "w1": jax.random.uniform(k1, (dim_hidden, dim_input), jnp.float32, -bound1, bound1),
        "b1": jax.random.uniform(k2, (dim_hidden,), jnp.float32, -bound1, bound1),
        "w2": jax.random.uniform(k3, (dim_hidden, dim_hidden), jnp.float32, -bound2, bound2),
        "b2": jax.random.uniform(k4, (dim_hidden,), jnp.float32, -bound2, bound2),
    }


if __name__ == "__main__":
    # Small shapes consistent with the module's constraints:
    #   x1: (batch, dim_input*dim_input, D1, dim_input), dim_hidden = D1*dim_input.
    batch, dim_input, dim_hidden, d1_dim = 2, 8, 16, 2

    key = jax.random.PRNGKey(0)
    pkey, xkey = jax.random.split(key)
    params = init_params(pkey, dim_input, dim_hidden)
    x1 = jax.random.normal(
        xkey, (batch, dim_input * dim_input, d1_dim, dim_input), jnp.float32)

    # Fold + pack the weights ONCE at init (HIGHEST precision, plain JAX).
    w_packed = jax.block_until_ready(
        pack_effective_params(params, d1_dim, dim_input))

    fwd = jax.jit(model_forward)
    out = jax.block_until_ready(fwd(x1, w_packed))

    ref = jax.block_until_ready(reference_model(x1, params))

    assert out.shape == ref.shape, (out.shape, ref.shape)
    assert jnp.allclose(out, ref, atol=1e-5, rtol=1e-5), \
        float(jnp.max(jnp.abs(out - ref)))
    print("KERNEL_OK")
</pallas_src>

<mosaic_0001>
module attributes {stable_mosaic.version = 11 : i64} {
  func.func @_fused_model_kernel(%arg0: i32, %arg1: memref<24x128xf32, #tpu.memory_space<vmem>>, %arg2: memref<32x24xf32, #tpu.memory_space<vmem>>, %arg3: memref<32x128xf32, #tpu.memory_space<vmem>>) attributes {dimension_semantics = [#tpu.dimension_semantics<arbitrary>], iteration_bounds = array<i64: 1>, scalar_prefetch = 0 : i64, scratch_operands = 0 : i64, tpu.core_type = #tpu.core_type<tc>, window_params = [{pipeline_mode = #tpu.pipeline_mode<synchronous>, transform_indices = @transform_0, window_bounds = array<i64: 24, 128>}, {pipeline_mode = #tpu.pipeline_mode<synchronous>, transform_indices = @transform_1, window_bounds = array<i64: 32, 24>}, {pipeline_mode = #tpu.pipeline_mode<synchronous>, transform_indices = @transform_2, window_bounds = array<i64: 32, 128>}]} {
    %c0 = arith.constant 0 : index
    %c0_0 = arith.constant 0 : index
    %0 = vector.load %arg2[%c0, %c0_0] : memref<32x24xf32, #tpu.memory_space<vmem>>, vector<32x24xf32>
    %c0_1 = arith.constant 0 : index
    %c0_2 = arith.constant 0 : index
    %1 = vector.load %arg1[%c0_1, %c0_2] : memref<24x128xf32, #tpu.memory_space<vmem>>, vector<24x128xf32>
    %cst = arith.constant dense<0.000000e+00> : vector<32x128xf32>
    %2 = tpu.matmul %0, %1, %cst {dimension_numbers = #tpu.dot_dimension_numbers<[1], [0], [0], [1], [0, 0, 1, 1], [], []>} : vector<32x24xf32>, vector<24x128xf32>, vector<32x128xf32> -> vector<32x128xf32>
    %c0_3 = arith.constant 0 : index
    %c0_4 = arith.constant 0 : index
    %3 = vector.load %arg3[%c0_3, %c0_4] : memref<32x128xf32, #tpu.memory_space<vmem>>, vector<32x128xf32>
    tpu.vector_store %arg3[%c0_3, %c0_4], %2 {strides = array<i32>} : memref<32x128xf32, #tpu.memory_space<vmem>>, vector<32x128xf32>,
    return
  }
  func.func @transform_0(%arg0: i32) -> (i32, i32) {
    %c0_i32 = arith.constant 0 : i32
    %c0_i32_0 = arith.constant 0 : i32
    %c0_i32_1 = arith.constant 0 : i32
    return %c0_i32, %c0_i32_0 : i32, i32
  }
  func.func @transform_1(%arg0: i32) -> (i32, i32) {
    %c0_i32 = arith.constant 0 : i32
    %c0_i32_0 = arith.constant 0 : i32
    %c0_i32_1 = arith.constant 0 : i32
    return %c0_i32, %c0_i32_0 : i32, i32
  }
  func.func @transform_2(%arg0: i32) -> (i32, i32) {
    %c0_i32 = arith.constant 0 : i32
    %c0_i32_0 = arith.constant 0 : i32
    %c0_i32_1 = arith.constant 0 : i32
    return %c0_i32, %c0_i32_0 : i32, i32
  }
}

</mosaic_0001>

<llo_original>
// kernel: model_forward.2
$region0: #{model_forward.2}
  #allocation0 [shape = 'u32[]', space=smem, size = 0x4, offset = 0x4, fixed_abs, tag = 'smem constant byte address 0x4 - core index']
  #allocation1 [shape = 'u32[144,128]{1,0:T(1,128)}', space=vmem, size = 0x12000, scoped, tag = 'internal scratch']
  #allocation2 [shape = 'u32[2048]{0}', space=vmem, size = 0x2000, scoped, tag = 'scoped memory for model_forward.2']
  #allocation3 [shape = 'u32[2048]{0}', space=vmem, size = 0x2000, scoped, tag = 'scoped memory for model_forward.2']
  #allocation4 [shape = 'u32[2048]{0}', space=vmem, size = 0x2000, scoped, tag = 'scoped memory for model_forward.2']
  #allocation5 [shape = 'u32[2048]{0}', space=vmem, size = 0x2000, scoped, tag = 'scoped memory for model_forward.2']
  #allocation6 [shape = 'u32[2048]{0}', space=vmem, size = 0x2000, scoped, tag = 'scoped memory for model_forward.2']
  %s0 = inlined_call_operand.vmem [shape: f32[32,24], index: 0, kind: input, shape index: {}]
  %s1 = inlined_call_operand.vmem [shape: f32[16,128], index: 1, kind: input, shape index: {}]
  %s2 = inlined_call_operand.<no memory space> [shape: f32[], index: 2, kind: input, shape index: {}]
  %s3 = inlined_call_operand.vmem [shape: f32[24], index: 3, kind: input, shape index: {}]
  %s4 = inlined_call_operand.vmem [shape: f32[24], index: 4, kind: input, shape index: {}]
  %s5 = inlined_call_operand.vmem [shape: f32[32,128], index: 5, kind: output, shape index: {}]
  %s6 = sld [smem:[#allocation0]]
  $region26: #{model_forward.2} parent=0
    _
  %s8 = ssub.s32 1, %s6
  %s9 = scalar_select 0, %s8, %s6
  %v10 = vstv %s2
  $region1: #{model_forward.2} parent=0
    #allocation7 [shape = 'u8[12288]{0}', space=vmem, size = 0x3000, dematerialized = true, scoped, tag = 'FusionAdapter Buffer %fusion.1 = f32[24,128]{1,0:T(8,128)} fusion(%param_1.12, %param_2.7, %param_3.5, %param_4.2), kind=kLoop, calls=%fused_computation.1.clone, metadata={op_name="jit(model_forward)/concatenate" stack_frame_id=10}']
    // Predicated region
    $region2: #{model_forward.2} parent=1 // pred_check
      _
    $region3: #{model_forward.2} parent=1 // pred_check_branch
      %12 = sbr.rel (0) target = $region5
    $region4: #{model_forward.2} parent=1 // pred_region
      _
    $region5: #{model_forward.2} parent=1 // pred_fallthru
      _
    // Predicated region
    $region6: #{model_forward.2} parent=1 // pred_check
      _
    $region7: #{model_forward.2} parent=1 // pred_check_branch
      %14 = sbr.rel (0) target = $region9
    $region8: #{model_forward.2} parent=1 // pred_region
      _
    $region9: #{model_forward.2} parent=1 // pred_fallthru
      _
    // Predicated region
    $region10: #{model_forward.2} parent=1 // pred_check
      _
    $region11: #{model_forward.2} parent=1 // pred_check_branch
      %16 = sbr.rel (0) target = $region13
    $region12: #{model_forward.2} parent=1 // pred_region
      _
    $region13: #{model_forward.2} parent=1 // pred_fallthru
      _
    // Predicated region
    $region14: #{model_forward.2} parent=1 // pred_check
      _
    $region15: #{model_forward.2} parent=1 // pred_check_branch
      %18 = sbr.rel (0) target = $region17
    $region16: #{model_forward.2} parent=1 // pred_region
      _
    $region17: #{model_forward.2} parent=1 // pred_fallthru
      _
    %v19 = vld [vmem:[%s1] sm:$0xff]
    %v20 = vld [vmem:[%s3] ss:$0 sm:$0xff]
    %22 = vbcast.lane.b32.xlu0 %v20, 256
    %v23 = vpop.permute.xlu0 %22
    %v24 = vld [vmem:[%s4] ss:$0 sm:$0xff]
    %26 = vbcast.lane.b32.xlu0 %v24, 256
    %v27 = vpop.permute.xlu0 %26
    %28 = xla_tuple %v19, %v27
    %29 = xla_tuple %28
    %v30 = vmax.f32 %v19, %v27
    %31 = xla_tuple %v30
    %32 = xla_tuple %v30, %v23
    %33 = xla_tuple %32
    %v34 = vmax.f32 %v30, %v23
    %35 = xla_tuple %v34
    %37 = vst [vmem:[#allocation7] sm:$0xff] %v34
    %s38 = scalar_lea.vmem %s1, 8
    %v39 = vld [vmem:[%s38] sm:$0xff]
    %v40 = vld [vmem:[%s3] ss:$0 sm:$0xff]
    %s42 = sor.u32 256, 8
    %43 = vbcast.lane.b32.xlu0 %v40, %s42
    %v44 = vpop.permute.xlu0 %43
    %v45 = vld [vmem:[%s4] ss:$0 sm:$0xff]
    %s47 = sor.u32 256, 8
    %48 = vbcast.lane.b32.xlu0 %v45, %s47
    %v49 = vpop.permute.xlu0 %48
    %50 = xla_tuple %v39, %v49
    %51 = xla_tuple %50
    %v52 = vmax.f32 %v39, %v49
    %53 = xla_tuple %v52
    %54 = xla_tuple %v52, %v44
    %55 = xla_tuple %54
    %v56 = vmax.f32 %v52, %v44
    %57 = xla_tuple %v56
    %s58 = scalar_lea.vmem [#allocation7], 8
    %60 = vst [vmem:[%s58] sm:$0xff] %v56
    %v61 = vld [vmem:[%s3] ss:$0 sm:$0xff]
    %s63 = sor.u32 256, 16
    %64 = vbcast.lane.b32.xlu0 %v61, %s63
    %v65 = vpop.permute.xlu0 %64
    %v66 = vld [vmem:[%s4] ss:$0 sm:$0xff]
    %s68 = sor.u32 256, 16
    %69 = vbcast.lane.b32.xlu0 %v66, %s68
    %v70 = vpop.permute.xlu0 %69
    %71 = xla_tuple %v10, %v70
    %72 = xla_tuple %71
    %v73 = vmax.f32 %v10, %v70
    %74 = xla_tuple %v73
    %75 = xla_tuple %v73, %v65
    %76 = xla_tuple %75
    %v77 = vmax.f32 %v73, %v65
    %78 = xla_tuple %v77
    %s79 = scalar_lea.vmem [#allocation7], 16
    %81 = vst [vmem:[%s79] sm:$0xff] %v77
    %v82 = vld [vmem:[%s0] sm:$0xff]
    %v83 = vld [vmem:[%s0 + $0x8] sm:$0xff]
    %v84 = vld [vmem:[%s0 + $0x10] sm:$0xff]
    %v85 = vld [vmem:[%s0 + $0x18] sm:$0xff]
    %v86 = vld [vmem:[#allocation7] sm:$0xff]
    %v87 = vld [vmem:[#allocation7 + $0x8] sm:$0xff]
    %v88 = vld [vmem:[#allocation7 + $0x10] sm:$0xff]
    %vm89 = vcmask 195584
    %v91 = vsel %vm89, %v82, 0
    %v94 = vsel %vm89, %v83, 0
    %v97 = vsel %vm89, %v84, 0
    %v100 = vsel %vm89, %v85, 0
    %102 = vmatprep.subr.mxu0 0.0
    %103 = vmatpush1.msra.mxu0 %v86
    %104 = vmatprep.subr.mxu0 0.0
    %105 = vmatpush1.msra.mxu0 %v87
    %106 = vmatprep.subr.mxu0 0.0
    %107 = vmatpush1.msra.mxu0 %v88
    %108 = vmatprep.subr.mxu0 0.0
    %109 = vmatpush1.msra.mxu0 0.0
    %110 = vmatprep.subr.mxu0 0.0
    %111 = vmatpush1.msra.mxu0 0.0
    %112 = vmatprep.subr.mxu0 0.0
    %113 = vmatpush1.msra.mxu0 0.0
    %114 = vmatprep.subr.mxu0 0.0
    %115 = vmatpush1.msra.mxu0 0.0
    %116 = vmatprep.subr.mxu0 0.0
    %117 = vmatpush1.msra.mxu0 0.0
    %118 = vmatprep.subr.mxu0 0.0
    %119 = vmatpush1.msra.mxu0 0.0
    %120 = vmatprep.subr.mxu0 0.0
    %121 = vmatpush1.msra.mxu0 0.0
    %122 = vmatprep.subr.mxu0 0.0
    %123 = vmatpush1.msra.mxu0 0.0
    %124 = vmatprep.subr.mxu0 0.0
    %125 = vmatpush1.msra.mxu0 0.0
    %126 = vmatprep.subr.mxu0 0.0
    %127 = vmatpush1.msra.mxu0 0.0
    %128 = vmatprep.subr.mxu0 0.0
    %129 = vmatpush1.msra.mxu0 0.0
    %130 = vmatprep.subr.mxu0 0.0
    %131 = vmatpush1.msra.mxu0 0.0
    %132 = vmatprep.subr.mxu0 0.0
    %133 = vmatpush1.msra.mxu0 0.0
    %134 = vmatprep.subr.mxu0 0.0
    %135 = vmatpush1.msra.mxu0 0.0
    %136 = vmatprep.subr.mxu0 0.0
    %137 = vmatpush1.msra.mxu0 0.0
    %138 = vmatprep.subr.mxu0 0.0
    %139 = vmatpush1.msra.mxu0 0.0
    %140 = vmatprep.subr.mxu0 0.0
    %141 = vmatpush1.msra.mxu0 0.0
    %142 = vmatprep.subr.mxu0 0.0
    %143 = vmatpush1.msra.mxu0 0.0
    %144 = vmatprep.subr.mxu0 0.0
    %145 = vmatpush1.msra.mxu0 0.0
    %146 = vmatprep.subr.mxu0 0.0
    %147 = vmatpush1.msra.mxu0 0.0
    %148 = vmatprep.subr.mxu0 0.0
    %149 = vmatpush1.msra.mxu0 0.0
    %150 = vmatprep.subr.mxu0 0.0
    %151 = vmatpush1.msra.mxu0 0.0
    %152 = vmatprep.subr.mxu0 0.0
    %153 = vmatpush1.msra.mxu0 0.0
    %154 = vmatprep.subr.mxu0 0.0
    %155 = vmatpush1.msra.mxu0 0.0
    %156 = vmatprep.subr.mxu0 0.0
    %157 = vmatpush1.msra.mxu0 0.0
    %158 = vmatprep.subr.mxu0 0.0
    %159 = vmatpush1.msra.mxu0 0.0
    %160 = vmatprep.subr.mxu0 0.0
    %161 = vmatpush1.msra.mxu0 0.0
    %162 = vmatprep.subr.mxu0 0.0
    %163 = vmatpush1.msra.mxu0 0.0
    %164 = vmatprep.subr.mxu0 0.0
    %165 = vmatpush1.msra.mxu0 0.0
    %166 = vmatprep.mubr.f32.mxu0 0.0
    %167 = vmatmul.mubr.f32.gmra.mrb[0].mxu0 %v91
    %v168 = vpop.f32.mrb[0].mxu0
    %v169 = vadd.f32 0.0, %v168
    %v170 = vpop.f32.mrb[0].mxu0
    %171 = vmatprep.mubr.f32.mxu0 0.0
    %172 = vmatmul.mubr.f32.gmra.mrb[0].mxu0 %v94
    %v173 = vpop.f32.mrb[0].mxu0
    %v174 = vadd.f32 0.0, %v173
    %v175 = vpop.f32.mrb[0].mxu0
    %176 = vmatprep.mubr.f32.mxu0 0.0
    %177 = vmatmul.mubr.f32.gmra.mrb[0].mxu0 %v97
    %v178 = vpop.f32.mrb[0].mxu0
    %v179 = vadd.f32 0.0, %v178
    %v180 = vpop.f32.mrb[0].mxu0
    %181 = vmatprep.mubr.f32.mxu0 0.0
    %182 = vmatmul.mubr.f32.gmra.mrb[0].mxu0 %v100
    %v183 = vpop.f32.mrb[0].mxu0
    %v184 = vadd.f32 0.0, %v183
    %v185 = vpop.f32.mrb[0].mxu0
    %186 = vdwg.mxu0
    %187 = vst [vmem:[%s5] sm:$0xff] %v169
    %188 = vst [vmem:[%s5 + $0x8] sm:$0xff] %v174
    %189 = vst [vmem:[%s5 + $0x10] sm:$0xff] %v179
    %190 = vst [vmem:[%s5 + $0x18] sm:$0xff] %v184
    // Predicated region
    $region18: #{model_forward.2} parent=1 // pred_check
      _
    $region19: #{model_forward.2} parent=1 // pred_check_branch
      %192 = sbr.rel (0) target = $region21
    $region20: #{model_forward.2} parent=1 // pred_region
      _
    $region21: #{model_forward.2} parent=1 // pred_fallthru
      _
    // Predicated region
    $region22: #{model_forward.2} parent=1 // pred_check
      _
    $region23: #{model_forward.2} parent=1 // pred_check_branch
      %194 = sbr.rel (0) target = $region25
    $region24: #{model_forward.2} parent=1 // pred_region
      _
    $region25: #{model_forward.2} parent=1 // pred_fallthru
      _

</llo_original>
